<compile_context>
chip_gen: v7x
topology: tpu7x:2x2x1
jax: 0.10.0
libtpu: 0.0.40
codegen_flags: <defaults>
</compile_context>

<pallas_src>
import jax
import jax.numpy as jnp
from jax.experimental import pallas as pl
from jax.experimental.pallas import tpu as pltpu


def _round_up(x, m):
    return (x + m - 1) // m * m


# ------------------------------ Pallas kernel ------------------------------

def _linear_relu_kernel(x_ref, w_ref, b_ref, o_ref, acc_ref):
    # x_ref: (tm, tk) bf16, w_ref: (tk, tn) bf16, b_ref: (1, tn) f32,
    # o_ref: (tm, tn) f32, acc_ref: (tm, tn) f32 scratch.
    k = pl.program_id(2)

    @pl.when(k == 0)
    def _():
        acc_ref[...] = jnp.zeros_like(acc_ref)

    acc_ref[...] += jnp.dot(x_ref[...], w_ref[...],
                            preferred_element_type=jnp.float32)

    @pl.when(k == pl.num_programs(2) - 1)
    def _():
        # Fused bias + ReLU epilogue; activation written to HBM exactly once.
        o_ref[...] = jnp.maximum(acc_ref[...] + b_ref[...], 0.0)


# ------------------------------ Tile selection ------------------------------

def _pick_tk(K):
    # Single K block for small/medium K (a full-dim block is exempt from the
    # 128-divisibility rule); otherwise the largest 128-multiple divisor.
    if K <= 2048:
        return K
    for t in (1024, 512, 256, 128):
        if K % t == 0:
            return t
    return K  # TODO(synk): pad K for very large non-128-multiple in_features.


def _pick_tn(Np):
    for t in (512, 256, 128):
        if Np % t == 0:
            return t
    return Np


# --------------------------------- Wrapper ----------------------------------

def linear_relu_forward(x, w, b):
    """relu(x @ w + b). x: (..., K) f32, w: (K, N) f32, b: (N,) f32.

    Note: operands are streamed through the MXU as bf16 (f32 accumulation) —
    an accepted precision tradeoff vs. torch.nn.Linear f32.
    """
    lead = x.shape[:-1]
    K = x.shape[-1]
    N = w.shape[1]

    x2 = x.reshape(-1, K).astype(jnp.bfloat16)
    M = x2.shape[0]

    # Lane-dense output: pad out_features to a multiple of 128 (small, weight
    # side only).  M is NOT padded — Pallas masks the ragged edge block.
    Np = _round_up(N, 128)
    w_b = w.astype(jnp.bfloat16)
    if Np != N:
        w_b = jnp.pad(w_b, ((0, 0), (0, Np - N)))
        b_p = jnp.pad(b, (0, Np - N)).reshape(1, Np)
    else:
        b_p = b.reshape(1, Np)

    tk = _pick_tk(K)
    tn = _pick_tn(Np)
    tm = min(512, _round_up(M, 8))

    grid_m = -(-M // tm)
    grid_n = Np // tn
    grid_k = K // tk

    # Megacore (v7x, 2 TCs): ensure >=2 parallel grid points by splitting the
    # lane-aligned N axis rather than under-filling the MXU on M.
    if grid_m * grid_n < 2 and tn % 256 == 0:
        tn //= 2
        grid_n = Np // tn

    # Explicit VMEM budget from the actual tile footprint (double-buffered
    # bf16 operand tiles + double-buffered f32 out tile + f32 accumulator),
    # capped under v7x's 64 MiB physical VMEM.
    tile_bytes = (2 * (tm * tk + tk * tn) * 2      # x, W tiles (bf16, 2 bufs)
                  + 2 * tm * tn * 4                # out tile (f32, 2 bufs)
                  + tm * tn * 4                    # accumulator scratch
                  + 2 * tn * 4)                    # bias tile
    vmem_limit = int(min(max(tile_bytes + (16 << 20), 32 << 20), 48 << 20))

    # Grid order: put the larger operand on the outer axis so it is streamed
    # from HBM only once (matters when grid_k == 1); reduction axis stays last.
    if K * Np >= M * K:   # weight larger than activations -> keep W resident
        grid = (grid_n, grid_m, grid_k)
        x_map = lambda j, i, k: (i, k)
        w_map = lambda j, i, k: (k, j)
        b_map = lambda j, i, k: (0, j)
        o_map = lambda j, i, k: (i, j)
    else:                 # activations larger -> keep x row tile resident
        grid = (grid_m, grid_n, grid_k)
        x_map = lambda i, j, k: (i, k)
        w_map = lambda i, j, k: (k, j)
        b_map = lambda i, j, k: (0, j)
        o_map = lambda i, j, k: (i, j)

    out = pl.pallas_call(
        _linear_relu_kernel,
        out_shape=jax.ShapeDtypeStruct((M, Np), jnp.float32),
        grid=grid,
        in_specs=[
            pl.BlockSpec((tm, tk), x_map),   # activation tile (bf16)
            pl.BlockSpec((tk, tn), w_map),   # weight tile (bf16)
            pl.BlockSpec((1, tn), b_map),    # bias tile (f32)
        ],
        out_specs=pl.BlockSpec((tm, tn), o_map),
        scratch_shapes=[pltpu.VMEM((tm, tn), jnp.float32)],
        compiler_params=pltpu.CompilerParams(
            dimension_semantics=("parallel", "parallel", "arbitrary"),
            vmem_limit_bytes=vmem_limit),
    )(x2, w_b, b_p)

    if Np != N:
        out = out[:, :N]
    return out.reshape(*lead, N)


# ---------------------------- Deterministic init ----------------------------

def init_linear_params(key, in_features, out_features):
    # Matches torch.nn.Linear default init: U(-1/sqrt(in), 1/sqrt(in)).
    wk, bk = jax.random.split(key)
    bound = 1.0 / jnp.sqrt(jnp.float32(in_features))
    w = jax.random.uniform(wk, (in_features, out_features), jnp.float32,
                           -bound, bound)
    b = jax.random.uniform(bk, (out_features,), jnp.float32, -bound, bound)
    return w, b


# ----------------------------------- Main -----------------------------------

if __name__ == "__main__":
    batch, seq, in_features, out_features = 2, 8, 32, 32
    pkey, xkey = jax.random.split(jax.random.PRNGKey(0))
    w, b = init_linear_params(pkey, in_features, out_features)
    x = jax.random.normal(xkey, (batch, seq, in_features), jnp.float32)

    fwd = jax.jit(linear_relu_forward)
    y = fwd(x, w, b)
    jax.block_until_ready(y)

    assert y.shape == (batch, seq, out_features) and y.dtype == jnp.float32
    # Loose tolerance: operands are streamed as bf16 (f32 accumulation).
    ref = jnp.maximum(x @ w + b, 0.0)
    assert jnp.allclose(y, ref, atol=5e-2, rtol=5e-2)
    print("KERNEL_OK")
</pallas_src>

<mosaic_0001>
module attributes {stable_mosaic.version = 11 : i64} {
  func.func @_linear_relu_kernel(%arg0: i32, %arg1: i32, %arg2: i32, %arg3: memref<16x32xbf16, #tpu.memory_space<vmem>>, %arg4: memref<32x128xbf16, #tpu.memory_space<vmem>>, %arg5: memref<1x128xf32, #tpu.memory_space<vmem>>, %arg6: memref<16x128xf32, #tpu.memory_space<vmem>>, %arg7: memref<16x128xf32, #tpu.memory_space<vmem>>) attributes {dimension_semantics = [#tpu.dimension_semantics<parallel>, #tpu.dimension_semantics<parallel>, #tpu.dimension_semantics<arbitrary>], iteration_bounds = array<i64: 1, 1, 1>, scalar_prefetch = 0 : i64, scratch_operands = 1 : i64, tpu.core_type = #tpu.core_type<tc>, window_params = [{transform_indices = @transform_0, window_bounds = array<i64: 16, 32>}, {transform_indices = @transform_1, window_bounds = array<i64: 32, 128>}, {transform_indices = @transform_2, window_bounds = array<i64: 1, 128>}, {transform_indices = @transform_3, window_bounds = array<i64: 16, 128>}]} {
    %c0_i32 = arith.constant 0 : i32
    %0 = arith.cmpi eq, %arg2, %c0_i32 : i32
    %1 = arith.extui %0 : i1 to i32
    %c0_i32_0 = arith.constant 0 : i32
    %2 = arith.cmpi ne, %1, %c0_i32_0 : i32
    scf.if %2 {
      %cst_10 = arith.constant 0.000000e+00 : f32
      %12 = vector.broadcast %cst_10 : f32 to vector<16x128xf32>
      %c0_11 = arith.constant 0 : index
      %c0_12 = arith.constant 0 : index
      %13 = vector.load %arg7[%c0_11, %c0_12] : memref<16x128xf32, #tpu.memory_space<vmem>>, vector<16x128xf32>
      tpu.vector_store %arg7[%c0_11, %c0_12], %12 {strides = array<i32>} : memref<16x128xf32, #tpu.memory_space<vmem>>, vector<16x128xf32>,
    } else {
    }
    %c0 = arith.constant 0 : index
    %c0_1 = arith.constant 0 : index
    %3 = vector.load %arg7[%c0, %c0_1] : memref<16x128xf32, #tpu.memory_space<vmem>>, vector<16x128xf32>
    %c0_2 = arith.constant 0 : index
    %c0_3 = arith.constant 0 : index
    %4 = vector.load %arg3[%c0_2, %c0_3] : memref<16x32xbf16, #tpu.memory_space<vmem>>, vector<16x32xbf16>
    %c0_4 = arith.constant 0 : index
    %c0_5 = arith.constant 0 : index
    %5 = vector.load %arg4[%c0_4, %c0_5] : memref<32x128xbf16, #tpu.memory_space<vmem>>, vector<32x128xbf16>
    %cst = arith.constant dense<0.000000e+00> : vector<16x128xf32>
    %6 = tpu.matmul %4, %5, %cst {dimension_numbers = #tpu.dot_dimension_numbers<[1], [0], [0], [1], [0, 0, 1, 1], [], []>} : vector<16x32xbf16>, vector<32x128xbf16>, vector<16x128xf32> -> vector<16x128xf32>
    %7 = arith.addf %3, %6 : vector<16x128xf32>
    %c0_6 = arith.constant 0 : index
    %c0_7 = arith.constant 0 : index
    %8 = vector.load %arg7[%c0_6, %c0_7] : memref<16x128xf32, #tpu.memory_space<vmem>>, vector<16x128xf32>
    tpu.vector_store %arg7[%c0_6, %c0_7], %7 {strides = array<i32>} : memref<16x128xf32, #tpu.memory_space<vmem>>, vector<16x128xf32>,
    %c0_i32_8 = arith.constant 0 : i32
    %9 = arith.cmpi eq, %arg2, %c0_i32_8 : i32
    %10 = arith.extui %9 : i1 to i32
    %c0_i32_9 = arith.constant 0 : i32
    %11 = arith.cmpi ne, %10, %c0_i32_9 : i32
    scf.if %11 {
      %c0_10 = arith.constant 0 : index
      %c0_11 = arith.constant 0 : index
      %12 = vector.load %arg7[%c0_10, %c0_11] : memref<16x128xf32, #tpu.memory_space<vmem>>, vector<16x128xf32>
      %c0_12 = arith.constant 0 : index
      %c0_13 = arith.constant 0 : index
      %13 = vector.load %arg5[%c0_12, %c0_13] : memref<1x128xf32, #tpu.memory_space<vmem>>, vector<1x128xf32>
      %14 = vector.broadcast %13 : vector<1x128xf32> to vector<16x128xf32>
      %15 = arith.addf %12, %14 : vector<16x128xf32>
      %cst_14 = arith.constant 0.000000e+00 : f32
      %16 = vector.broadcast %cst_14 : f32 to vector<16x128xf32>
      %17 = arith.maximumf %15, %16 : vector<16x128xf32>
      %c0_15 = arith.constant 0 : index
      %c0_16 = arith.constant 0 : index
      %18 = vector.load %arg6[%c0_15, %c0_16] : memref<16x128xf32, #tpu.memory_space<vmem>>, vector<16x128xf32>
      tpu.vector_store %arg6[%c0_15, %c0_16], %17 {strides = array<i32>} : memref<16x128xf32, #tpu.memory_space<vmem>>, vector<16x128xf32>,
    } else {
    }
    return
  }
  func.func @transform_0(%arg0: i32, %arg1: i32, %arg2: i32) -> (i32, i32) {
    %c0_i32 = arith.constant 0 : i32
    return %arg1, %arg2 : i32, i32
  }
  func.func @transform_1(%arg0: i32, %arg1: i32, %arg2: i32) -> (i32, i32) {
    %c0_i32 = arith.constant 0 : i32
    return %arg2, %arg0 : i32, i32
  }
  func.func @transform_2(%arg0: i32, %arg1: i32, %arg2: i32) -> (i32, i32) {
    %c0_i32 = arith.constant 0 : i32
    %c0_i32_0 = arith.constant 0 : i32
    return %c0_i32, %arg0 : i32, i32
  }
  func.func @transform_3(%arg0: i32, %arg1: i32, %arg2: i32) -> (i32, i32) {
    %c0_i32 = arith.constant 0 : i32
    return %arg1, %arg0 : i32, i32
  }
}

</mosaic_0001>

<llo_original>
// kernel: linear_relu_forward.1
$region0: #{linear_relu_forward.1}
  #allocation0 [shape = 'u32[]', space=smem, size = 0x4, offset = 0x4, fixed_abs, tag = 'smem constant byte address 0x4 - core index']
  #allocation1 [shape = 'u32[144,128]{1,0:T(1,128)}', space=vmem, size = 0x12000, scoped, tag = 'internal scratch']
  #allocation2 [shape = 'f32[16,128]{1,0:T(8,128)}', space=vmem, size = 0x2000, scoped, tag = 'scratch operand']
  %s0 = inlined_call_operand.vmem [shape: bf16[16,32], index: 0, kind: input, shape index: {}]
  %s1 = inlined_call_operand.vmem [shape: bf16[32,128], index: 1, kind: input, shape index: {}]
  %s2 = inlined_call_operand.vmem [shape: f32[1,128], index: 2, kind: input, shape index: {}]
  %s3 = inlined_call_operand.vmem [shape: f32[16,128], index: 3, kind: output, shape index: {}]
  %s4 = sld [smem:[#allocation0]]
  $region30: #{linear_relu_forward.1} parent=0
    _
  %s6 = ssub.s32 1, %s4
  %s7 = scalar_select 0, %s6, %s4
  // Predicated region
  $region2: #{linear_relu_forward.1} parent=0 // pred_check
    _
  $region3: #{linear_relu_forward.1} parent=0 // pred_check_branch
    %9 = sbr.rel (0) target = $region5
  $region4: #{linear_relu_forward.1} parent=0 // pred_region
    _
  $region5: #{linear_relu_forward.1} parent=0 // pred_fallthru
    _
  // Predicated region
  $region6: #{linear_relu_forward.1} parent=0 // pred_check
    _
  $region7: #{linear_relu_forward.1} parent=0 // pred_check_branch
    %11 = sbr.rel (0) target = $region9
  $region8: #{linear_relu_forward.1} parent=0 // pred_region
    _
  $region9: #{linear_relu_forward.1} parent=0 // pred_fallthru
    _
  // Predicated region
  $region10: #{linear_relu_forward.1} parent=0 // pred_check
    _
  $region11: #{linear_relu_forward.1} parent=0 // pred_check_branch
    %13 = sbr.rel (0) target = $region13
  $region12: #{linear_relu_forward.1} parent=0 // pred_region
    _
  $region13: #{linear_relu_forward.1} parent=0 // pred_fallthru
    _
  %p15 = scmp.eq.s32.totalorder 0, 0
  // Predicated region
  $region14: #{linear_relu_forward.1} parent=0 // pred_check
    %p16 = pneg %p15
  $region15: #{linear_relu_forward.1} parent=0 // pred_check_branch
    %18 = sbr.rel (%p16) target = $region17
  $region16: #{linear_relu_forward.1} parent=0 // pred_region
    %19 = vst [vmem:[#allocation2] sm:$0xff] 0.0
    %20 = vst [vmem:[#allocation2 + $0x8] sm:$0xff] 0.0
  $region17: #{linear_relu_forward.1} parent=0 // pred_fallthru
    _
  %v21 = vld [vmem:[#allocation2] sm:$0xff]
  %v22 = vld [vmem:[#allocation2 + $0x8] sm:$0xff]
  %v23 = vld [vmem:[%s0] sm:$0xf]
  %v24 = vld [vmem:[%s0 + $0x4] sm:$0xf]
  %v25 = vld [vmem:[%s1] sm:$0xf]
  %v26 = vld [vmem:[%s1 + $0x4] sm:$0xf]
  %v27 = vld [vmem:[%s1 + $0x8] sm:$0xf]
  %v28 = vld [vmem:[%s1 + $0xc] sm:$0xf]
  %v31 = vunpack.c.l.b16 %v23
  %v32 = vunpack.c.l.b16 %v24
  %v33 = vpack.c.b16 %v32, %v31
  %v38 = vunpack.c.l.b16 %v25
  %v39 = vunpack.c.l.b16 %v26
  %v40 = vunpack.c.l.b16 %v27
  %v41 = vunpack.c.l.b16 %v28
  %v42 = vpack.c.b16 %v39, %v38
  %v43 = vpack.c.b16 %v41, %v40
  %vm46 = vcmask 261120
  %v48 = vsel %vm46, %v33, 0
  %50 = vmatprep.subr.bf16.mxu0 0
  %51 = vmatpush1.bf16.msra.mxu0 %v42
  %52 = vmatprep.subr.bf16.mxu0 0
  %53 = vmatpush1.bf16.msra.mxu0 %v43
  %54 = vmatprep.subr.bf16.mxu0 0
  %55 = vmatpush1.bf16.msra.mxu0 0
  %56 = vmatprep.subr.bf16.mxu0 0
  %57 = vmatpush1.bf16.msra.mxu0 0
  %58 = vmatprep.subr.bf16.mxu0 0
  %59 = vmatpush1.bf16.msra.mxu0 0
  %60 = vmatprep.subr.bf16.mxu0 0
  %61 = vmatpush1.bf16.msra.mxu0 0
  %62 = vmatprep.subr.bf16.mxu0 0
  %63 = vmatpush1.bf16.msra.mxu0 0
  %64 = vmatprep.subr.bf16.mxu0 0
  %65 = vmatpush1.bf16.msra.mxu0 0
  %66 = vmatprep.subr.bf16.mxu0 0
  %67 = vmatpush1.bf16.msra.mxu0 0
  %68 = vmatprep.subr.bf16.mxu0 0
  %69 = vmatpush1.bf16.msra.mxu0 0
  %70 = vmatprep.subr.bf16.mxu0 0
  %71 = vmatpush1.bf16.msra.mxu0 0
  %72 = vmatprep.subr.bf16.mxu0 0
  %73 = vmatpush1.bf16.msra.mxu0 0
  %74 = vmatprep.subr.bf16.mxu0 0
  %75 = vmatpush1.bf16.msra.mxu0 0
  %76 = vmatprep.subr.bf16.mxu0 0
  %77 = vmatpush1.bf16.msra.mxu0 0
  %78 = vmatprep.subr.bf16.mxu0 0
  %79 = vmatpush1.bf16.msra.mxu0 0
  %80 = vmatprep.subr.bf16.mxu0 0
  %81 = vmatpush1.bf16.msra.mxu0 0
  %82 = vmatprep.mubr.bf16.mxu0 0
  %83 = vmatmul.mubr.bf16.gmra.mrb[0].mxu0 %v48
  %v84 = vpop.f32.mrb[0].mxu0
  %v85 = vadd.f32 0.0, %v84
  %v86 = vpop.f32.mrb[0].mxu0
  %v87 = vpop.f32.mrb[0].mxu0
  %v88 = vadd.f32 0.0, %v87
  %v89 = vpop.f32.mrb[0].mxu0
  %90 = vdwg.mxu0
  %v91 = vadd.f32 %v21, %v85
  %v92 = vadd.f32 %v22, %v88
  %93 = vst [vmem:[#allocation2] sm:$0xff] %v91
  %94 = vst [vmem:[#allocation2 + $0x8] sm:$0xff] %v92
  // Predicated region
  $region18: #{linear_relu_forward.1} parent=0 // pred_check
    %p95 = pneg %p15
  $region19: #{linear_relu_forward.1} parent=0 // pred_check_branch
    %97 = sbr.rel (%p95) target = $region21
  $region20: #{linear_relu_forward.1} parent=0 // pred_region
    %v98 = vld [vmem:[#allocation2] sm:$0xff]
    %v99 = vld [vmem:[#allocation2 + $0x8] sm:$0xff]
    %v100 = vld [vmem:[%s2] sm:$0x1]
    %v102 = vlaneseq
    %v103 = vshrl.u32 %v102, 7
    %v104 = vsub.s32 0, %v103
    %v105 = vrot.slane %v100, %v104
    %v107 = vadd.f32 %v98, %v105
    %v108 = vadd.f32 %v99, %v105
    %v109 = vmax.f32 %v107, 0.0
    %v110 = vmax.f32 %v108, 0.0
    %111 = vst [vmem:[%s3] sm:$0xff] %v109
    %112 = vst [vmem:[%s3 + $0x8] sm:$0xff] %v110
  $region21: #{linear_relu_forward.1} parent=0 // pred_fallthru
    _
  // Predicated region
  $region22: #{linear_relu_forward.1} parent=0 // pred_check
    _
  $region23: #{linear_relu_forward.1} parent=0 // pred_check_branch
    %114 = sbr.rel (0) target = $region25
  $region24: #{linear_relu_forward.1} parent=0 // pred_region
    _
  $region25: #{linear_relu_forward.1} parent=0 // pred_fallthru
    _
  // Predicated region
  $region26: #{linear_relu_forward.1} parent=0 // pred_check
    _
  $region27: #{linear_relu_forward.1} parent=0 // pred_check_branch
    %116 = sbr.rel (0) target = $region29
  $region28: #{linear_relu_forward.1} parent=0 // pred_region
    _
  $region29: #{linear_relu_forward.1} parent=0 // pred_fallthru
    _

</llo_original>
